<compile_context>
chip_gen: v7x
topology: tpu7x:2x2x1
jax: 0.10.0
libtpu: 0.0.40
codegen_flags: <defaults>
</compile_context>

<pallas_src>
import jax
import jax.numpy as jnp
from jax.experimental import pallas as pl
from jax.experimental.pallas import tpu as pltpu

LANE = 128
_MAX_TILE_ROWS = 1024  # 1024 * 128 * 4 B = 512 KiB per f32 input block


def _make_mse_kernel(tile_rows, rows_valid, blocks_per_split, inv_n, need_mask):
    """SSE accumulation kernel over grid (splits, blocks_per_split)."""

    def kernel(out_ref, pan_ref, part_ref, acc_ref):
        i = pl.program_id(1)

        @pl.when(i == 0)
        def _init():
            acc_ref[...] = jnp.zeros_like(acc_ref)

        # Cast in VMEM (keeps HBM traffic at the native input dtype).
        d = out_ref[...].astype(jnp.float32) - pan_ref[...].astype(jnp.float32)
        d2 = d * d

        if need_mask:  # static Python flag: only compiled in when rows are ragged
            c = pl.program_id(0)
            row_base = (c * blocks_per_split + i) * tile_rows
            rid = jax.lax.broadcasted_iota(jnp.int32, (tile_rows, LANE), 0) + row_base
            d2 = jnp.where(rid < rows_valid, d2, 0.0)

        # Elementwise VPU accumulation; no per-step cross-lane reduce.
        acc_ref[...] += d2

        @pl.when(i == pl.num_programs(1) - 1)
        def _finalize():
            # Single XLU reduce + fused 'mean' scaling on the last step only.
            total = jnp.sum(acc_ref[...]) * inv_n
            part_ref[...] = jnp.zeros_like(part_ref) + total

    return kernel


def rsp_mse_loss(out, pan, *, max_tile_rows=_MAX_TILE_ROWS, num_splits=2):
    """Pallas TPU equivalent of nn.MSELoss()(out, pan) (mean reduction)."""
    assert out.shape == pan.shape, "MSELoss requires matching shapes"
    n = out.size

    of = out.reshape(-1)
    pf = pan.reshape(-1)
    rows = pl.cdiv(n, LANE)
    pad = rows * LANE - n
    if pad:
        # Fallback only for element counts not divisible by 128; typical NCHW
        # tensors never hit this path, so no extra HBM copy is made normally.
        of = jnp.pad(of, (0, pad))
        pf = jnp.pad(pf, (0, pad))
    of = of.reshape(rows, LANE)
    pf = pf.reshape(rows, LANE)

    if rows <= max_tile_rows:
        tile_rows = rows            # full-dim block: always layout-legal
    else:
        tile_rows = max_tile_rows   # multiple of 8

    nblocks = pl.cdiv(rows, tile_rows)
    splits = num_splits if nblocks >= num_splits else 1
    bpc = pl.cdiv(nblocks, splits)                    # blocks per split/core
    need_mask = (splits * bpc * tile_rows != rows)    # ragged tail present?
    inv_n = 1.0 / float(n)                            # fused mean scaling

    def in_map(c, i):
        # Clamp so no block index is ever fully out of range; over-read rows
        # are zeroed by the in-kernel mask.
        return (jnp.minimum(c * bpc + i, nblocks - 1), 0)

    kernel = _make_mse_kernel(tile_rows, rows, bpc, inv_n, need_mask)

    partials = pl.pallas_call(
        kernel,
        out_shape=jax.ShapeDtypeStruct((splits, LANE), jnp.float32),
        grid_spec=pltpu.PrefetchScalarGridSpec(
            num_scalar_prefetch=0,
            grid=(splits, bpc),
            in_specs=[
                pl.BlockSpec((tile_rows, LANE), in_map),
                pl.BlockSpec((tile_rows, LANE), in_map),
            ],
            out_specs=pl.BlockSpec((1, LANE), lambda c, i: (c, 0)),
            scratch_shapes=[pltpu.VMEM((tile_rows, LANE), jnp.float32)],
        ),
        compiler_params=pltpu.CompilerParams(
            dimension_semantics=("parallel", "arbitrary"),
        ),
    )(of, pf)

    # One tiny op to combine the (at most 2) per-core partials.
    return jnp.sum(partials[:, 0])


if __name__ == "__main__":
    key = jax.random.PRNGKey(0)
    k1, k2, k3, k4 = jax.random.split(key, 4)

    # Primary small test, consistent with a pansharpening output vs PAN target.
    out = jax.random.normal(k1, (2, 4, 16, 16), dtype=jnp.float32)
    pan = jax.random.normal(k2, (2, 4, 16, 16), dtype=jnp.float32)
    loss = jax.block_until_ready(rsp_mse_loss(out, pan))
    ref = jnp.mean((out - pan) ** 2)
    assert jnp.allclose(loss, ref, rtol=1e-5, atol=1e-6), (loss, ref)

    # Secondary check exercising the multi-split + masked ragged-tail path.
    out2 = jax.random.normal(k3, (2, 4, 24, 16), dtype=jnp.float32)
    pan2 = jax.random.normal(k4, (2, 4, 24, 16), dtype=jnp.float32)
    loss2 = jax.block_until_ready(rsp_mse_loss(out2, pan2, max_tile_rows=8))
    ref2 = jnp.mean((out2 - pan2) ** 2)
    assert jnp.allclose(loss2, ref2, rtol=1e-5, atol=1e-6), (loss2, ref2)

    print("KERNEL_OK")
</pallas_src>

<mosaic_0001>
module attributes {stable_mosaic.version = 11 : i64} {
  func.func @kernel(%arg0: i32, %arg1: i32, %arg2: memref<16x128xf32, #tpu.memory_space<vmem>>, %arg3: memref<16x128xf32, #tpu.memory_space<vmem>>, %arg4: memref<1x128xf32, #tpu.memory_space<vmem>>, %arg5: memref<16x128xf32, #tpu.memory_space<vmem>>) attributes {dimension_semantics = [#tpu.dimension_semantics<parallel>, #tpu.dimension_semantics<arbitrary>], iteration_bounds = array<i64: 1, 1>, scalar_prefetch = 0 : i64, scratch_operands = 1 : i64, tpu.core_type = #tpu.core_type<tc>, window_params = [{transform_indices = @transform_0, window_bounds = array<i64: 16, 128>}, {transform_indices = @transform_1, window_bounds = array<i64: 16, 128>}, {transform_indices = @transform_2, window_bounds = array<i64: 1, 128>}]} {
    %c0_i32 = arith.constant 0 : i32
    %0 = arith.cmpi eq, %arg1, %c0_i32 : i32
    %1 = arith.extui %0 : i1 to i32
    %c0_i32_0 = arith.constant 0 : i32
    %2 = arith.cmpi ne, %1, %c0_i32_0 : i32
    scf.if %2 {
      %cst = arith.constant 0.000000e+00 : f32
      %13 = vector.broadcast %cst : f32 to vector<16x128xf32>
      %c0_10 = arith.constant 0 : index
      %c0_11 = arith.constant 0 : index
      %14 = vector.load %arg5[%c0_10, %c0_11] : memref<16x128xf32, #tpu.memory_space<vmem>>, vector<16x128xf32>
      tpu.vector_store %arg5[%c0_10, %c0_11], %13 {strides = array<i32>} : memref<16x128xf32, #tpu.memory_space<vmem>>, vector<16x128xf32>,
    } else {
    }
    %c0 = arith.constant 0 : index
    %c0_1 = arith.constant 0 : index
    %3 = vector.load %arg2[%c0, %c0_1] : memref<16x128xf32, #tpu.memory_space<vmem>>, vector<16x128xf32>
    %c0_2 = arith.constant 0 : index
    %c0_3 = arith.constant 0 : index
    %4 = vector.load %arg3[%c0_2, %c0_3] : memref<16x128xf32, #tpu.memory_space<vmem>>, vector<16x128xf32>
    %5 = arith.subf %3, %4 : vector<16x128xf32>
    %6 = arith.mulf %5, %5 : vector<16x128xf32>
    %c0_4 = arith.constant 0 : index
    %c0_5 = arith.constant 0 : index
    %7 = vector.load %arg5[%c0_4, %c0_5] : memref<16x128xf32, #tpu.memory_space<vmem>>, vector<16x128xf32>
    %8 = arith.addf %7, %6 : vector<16x128xf32>
    %c0_6 = arith.constant 0 : index
    %c0_7 = arith.constant 0 : index
    %9 = vector.load %arg5[%c0_6, %c0_7] : memref<16x128xf32, #tpu.memory_space<vmem>>, vector<16x128xf32>
    tpu.vector_store %arg5[%c0_6, %c0_7], %8 {strides = array<i32>} : memref<16x128xf32, #tpu.memory_space<vmem>>, vector<16x128xf32>,
    %c0_i32_8 = arith.constant 0 : i32
    %10 = arith.cmpi eq, %arg1, %c0_i32_8 : i32
    %11 = arith.extui %10 : i1 to i32
    %c0_i32_9 = arith.constant 0 : i32
    %12 = arith.cmpi ne, %11, %c0_i32_9 : i32
    scf.if %12 {
      %c0_10 = arith.constant 0 : index
      %c0_11 = arith.constant 0 : index
      %13 = vector.load %arg5[%c0_10, %c0_11] : memref<16x128xf32, #tpu.memory_space<vmem>>, vector<16x128xf32>
      %14 = vector.shape_cast %13 : vector<16x128xf32> to vector<1x16x128xf32>
      %cst = arith.constant dense<0.000000e+00> : vector<1xf32>
      %15 = vector.multi_reduction <add>, %14, %cst [1, 2] : vector<1x16x128xf32> to vector<1xf32>
      %16 = vector.shape_cast %15 : vector<1xf32> to vector<1x1x1xf32>
      %17 = vector.extract %16[0, 0, 0] : f32 from vector<1x1x1xf32>
      %cst_12 = arith.constant 4.8828125E-4 : f32
      %18 = arith.mulf %17, %cst_12 : f32
      %cst_13 = arith.constant 0.000000e+00 : f32
      %19 = vector.broadcast %cst_13 : f32 to vector<1x128xf32>
      %20 = vector.broadcast %18 : f32 to vector<1x128xf32>
      %21 = arith.addf %19, %20 : vector<1x128xf32>
      %c0_14 = arith.constant 0 : index
      %c0_15 = arith.constant 0 : index
      %22 = vector.load %arg4[%c0_14, %c0_15] : memref<1x128xf32, #tpu.memory_space<vmem>>, vector<1x128xf32>
      tpu.vector_store %arg4[%c0_14, %c0_15], %21 {strides = array<i32>} : memref<1x128xf32, #tpu.memory_space<vmem>>, vector<1x128xf32>,
    } else {
    }
    return
  }
  func.func @transform_0(%arg0: i32, %arg1: i32) -> (i32, i32) {
    %c1_i32 = arith.constant 1 : i32
    %0 = arith.muli %arg0, %c1_i32 : i32
    %1 = arith.addi %0, %arg1 : i32
    %c0_i32 = arith.constant 0 : i32
    %2 = arith.minsi %1, %c0_i32 : i32
    %c0_i32_0 = arith.constant 0 : i32
    %c0_i32_1 = arith.constant 0 : i32
    return %2, %c0_i32_0 : i32, i32
  }
  func.func @transform_1(%arg0: i32, %arg1: i32) -> (i32, i32) {
    %c1_i32 = arith.constant 1 : i32
    %0 = arith.muli %arg0, %c1_i32 : i32
    %1 = arith.addi %0, %arg1 : i32
    %c0_i32 = arith.constant 0 : i32
    %2 = arith.minsi %1, %c0_i32 : i32
    %c0_i32_0 = arith.constant 0 : i32
    %c0_i32_1 = arith.constant 0 : i32
    return %2, %c0_i32_0 : i32, i32
  }
  func.func @transform_2(%arg0: i32, %arg1: i32) -> (i32, i32) {
    %c0_i32 = arith.constant 0 : i32
    %c0_i32_0 = arith.constant 0 : i32
    return %arg0, %c0_i32 : i32, i32
  }
}

</mosaic_0001>

<llo_original>
// kernel: tpu_custom_call.1
$region0: #{tpu_custom_call.1}
  #allocation0 [shape = 'u32[]', space=smem, size = 0x4, offset = 0x4, fixed_abs, tag = 'smem constant byte address 0x4 - core index']
  #allocation1 [shape = 'u32[144,128]{1,0:T(1,128)}', space=vmem, size = 0x12000, scoped, tag = 'internal scratch']
  #allocation2 [shape = 'f32[16,128]{1,0:T(8,128)}', space=vmem, size = 0x2000, scoped, tag = 'scratch operand']
  %s0 = inlined_call_operand.hbm [shape: f32[16,128], index: 0, kind: input, shape index: {}]
  %s1 = inlined_call_operand.hbm [shape: f32[16,128], index: 1, kind: input, shape index: {}]
  %s2 = inlined_call_operand.hbm [shape: f32[1,128], index: 2, kind: output, shape index: {}]
  %s3 = sld [smem:[#allocation0]]
  $region34: #{tpu_custom_call.1} parent=0
    _
  %s5 = ssub.s32 1, %s3
  %s6 = scalar_select 0, %s5, %s3
  $region1: #{tpu_custom_call.1} parent=0
    #allocation3 [shape = 'u8[8192]{0}', space=vmem, size = 0x2000, scoped, tag = 'input window, operand 0, single buffered']
    #allocation4 [shape = 's32[1]{0}', space=sflag, size = 0x4, scoped, tag = 'scoped memory for tpu_custom_call.1']
    #allocation5 [shape = 's32[1]{0}', space=sflag, size = 0x4, scoped, tag = 'scoped memory for tpu_custom_call.1']
    #allocation6 [shape = 'u8[8192]{0}', space=vmem, size = 0x2000, scoped, tag = 'input window, operand 1, single buffered']
    #allocation7 [shape = 's32[1]{0}', space=sflag, size = 0x4, scoped, tag = 'scoped memory for tpu_custom_call.1']
    #allocation8 [shape = 'u8[512]{0}', space=vmem, size = 0x400, scoped, tag = 'output window, operand 0, single buffered']
    %7 = vsyncpa [#allocation4], 0
    %8 = vsyncpa [#allocation7], 0
    %9 = vsyncpa [#allocation5], 0
    // Predicated region
    $region2: #{tpu_custom_call.1} parent=1 // pred_check
      _
    $region3: #{tpu_custom_call.1} parent=1 // pred_check_branch
      %11 = sbr.rel (0) target = $region5
    $region4: #{tpu_custom_call.1} parent=1 // pred_region
      %s12 = sadd.s32 0, 0
      %p13 = scmp.lt.s32.totalorder %s12, 0
      %s14 = scalar_select %p13, %s12, 0
      %s15 = smul.u32 2, %s14
      %s17 = ssub.s32 256, 256
      %18 = vsyncadd [#allocation4], %s17
      %s19 = smul.addr %s15, 128
      %s20 = scalar_lea.hbm %s0, %s19
      %s21 = sshll.u32 [#allocation3], 4
      %s22 = int_to_ptr.vmem [resolvable:$true] %s21
      %27 = dma.hbm_to_vmem [thread:$0]  %s20, 256, %s22, [#allocation4], 128, 128, 8
    $region5: #{tpu_custom_call.1} parent=1 // pred_fallthru
      _
    // Predicated region
    $region6: #{tpu_custom_call.1} parent=1 // pred_check
      _
    $region7: #{tpu_custom_call.1} parent=1 // pred_check_branch
      %29 = sbr.rel (0) target = $region9
    $region8: #{tpu_custom_call.1} parent=1 // pred_region
      %s30 = sadd.s32 0, 0
      %p31 = scmp.lt.s32.totalorder %s30, 0
      %s32 = scalar_select %p31, %s30, 0
      %s33 = smul.u32 2, %s32
      %s35 = ssub.s32 256, 256
      %36 = vsyncadd [#allocation7], %s35
      %s37 = smul.addr %s33, 128
      %s38 = scalar_lea.hbm %s1, %s37
      %s39 = sshll.u32 [#allocation6], 4
      %s40 = int_to_ptr.vmem [resolvable:$true] %s39
      %45 = dma.hbm_to_vmem [thread:$0]  %s38, 256, %s40, [#allocation7], 128, 128, 8
    $region9: #{tpu_custom_call.1} parent=1 // pred_fallthru
      _
    // Predicated region
    $region10: #{tpu_custom_call.1} parent=1 // pred_check
      _
    $region11: #{tpu_custom_call.1} parent=1 // pred_check_branch
      %47 = sbr.rel (0) target = $region13
    $region12: #{tpu_custom_call.1} parent=1 // pred_region
      %48 = dma.done [#allocation4], 256
    $region13: #{tpu_custom_call.1} parent=1 // pred_fallthru
      _
    // Predicated region
    $region14: #{tpu_custom_call.1} parent=1 // pred_check
      _
    $region15: #{tpu_custom_call.1} parent=1 // pred_check_branch
      %50 = sbr.rel (0) target = $region17
    $region16: #{tpu_custom_call.1} parent=1 // pred_region
      %51 = dma.done [#allocation7], 256
    $region17: #{tpu_custom_call.1} parent=1 // pred_fallthru
      _
    %s52 = sadd.s32 0, 0
    %p53 = scmp.lt.s32.totalorder %s52, 0
    %s54 = scalar_select %p53, %s52, 0
    %s55 = smul.u32 2, %s54
    %s56 = sadd.s32 0, 0
    %p57 = scmp.lt.s32.totalorder %s56, 0
    %s58 = scalar_select %p57, %s56, 0
    %s59 = smul.u32 2, %s58
    %p60 = scmp.eq.s32.totalorder 0, 0
    // Predicated region
    $region18: #{tpu_custom_call.1} parent=1 // pred_check
      %p61 = pneg %p60
    $region19: #{tpu_custom_call.1} parent=1 // pred_check_branch
      %63 = sbr.rel (%p61) target = $region21
    $region20: #{tpu_custom_call.1} parent=1 // pred_region
      %64 = vst [vmem:[#allocation2] sm:$0xff] 0.0
      %65 = vst [vmem:[#allocation2 + $0x8] sm:$0xff] 0.0
    $region21: #{tpu_custom_call.1} parent=1 // pred_fallthru
      _
    %v66 = vld [vmem:[#allocation3] sm:$0xff]
    %v67 = vld [vmem:[#allocation3 + $0x8] sm:$0xff]
    %v68 = vld [vmem:[#allocation6] sm:$0xff]
    %v69 = vld [vmem:[#allocation6 + $0x8] sm:$0xff]
    %v70 = vsub.f32 %v66, %v68
    %v71 = vsub.f32 %v67, %v69
    %v72 = vmul.f32 %v70, %v70
    %v73 = vmul.f32 %v71, %v71
    %v74 = vld [vmem:[#allocation2] sm:$0xff]
    %v75 = vld [vmem:[#allocation2 + $0x8] sm:$0xff]
    %v76 = vadd.f32 %v74, %v72
    %v77 = vadd.f32 %v75, %v73
    %78 = vst [vmem:[#allocation2] sm:$0xff] %v76
    %79 = vst [vmem:[#allocation2 + $0x8] sm:$0xff] %v77
    // Predicated region
    $region22: #{tpu_custom_call.1} parent=1 // pred_check
      %p80 = pneg %p60
    $region23: #{tpu_custom_call.1} parent=1 // pred_check_branch
      %82 = sbr.rel (%p80) target = $region25
    $region24: #{tpu_custom_call.1} parent=1 // pred_region
      %v83 = vld [vmem:[#allocation2] sm:$0xff]
      %v84 = vld [vmem:[#allocation2 + $0x8] sm:$0xff]
      %v85 = vadd.f32 %v83, %v84
      %86 = vadd.xlane.f32.xlu0 %v85
      %v87 = vpop.xlane.xlu0 %86
      %v88 = vrot.slane %v87, 4
      %v89 = vadd.f32 %v87, %v88
      %v90 = vrot.slane %v89, 2
      %v91 = vadd.f32 %v89, %v90
      %v92 = vrot.slane %v91, 1
      %v93 = vadd.f32 %v91, %v92
      %s94 = vtos %v93
      %s95 = smul.f32 %s94, 0.00048828125
      %v96 = vstv %s95
      %v97 = vadd.f32 %v96, 0.0
      %98 = vst [vmem:[#allocation8] sm:$0x1] %v97
    $region25: #{tpu_custom_call.1} parent=1 // pred_fallthru
      _
    // Predicated region
    $region26: #{tpu_custom_call.1} parent=1 // pred_check
      _
    $region27: #{tpu_custom_call.1} parent=1 // pred_check_branch
      %100 = sbr.rel (0) target = $region29
    $region28: #{tpu_custom_call.1} parent=1 // pred_region
      %s102 = ssub.s32 16, 16
      %103 = vsyncadd [#allocation5], %s102
      %s105 = sshll.u32 [#allocation8], 4
      %s106 = int_to_ptr.vmem [resolvable:$true] %s105
      %108 = dma.vmem_to_hbm [thread:$0]  %s106, 16, %s2, [#allocation5]
    $region29: #{tpu_custom_call.1} parent=1 // pred_fallthru
      _
    // Predicated region
    $region30: #{tpu_custom_call.1} parent=1 // pred_check
      _
    $region31: #{tpu_custom_call.1} parent=1 // pred_check_branch
      %110 = sbr.rel (0) target = $region33
    $region32: #{tpu_custom_call.1} parent=1 // pred_region
      %111 = dma.done [#allocation5], 16
    $region33: #{tpu_custom_call.1} parent=1 // pred_fallthru
      _
    %112 = vsyncpa [#allocation4], 1
    %113 = vsyncpa [#allocation7], 1
    %114 = vsyncpa [#allocation5], 1

</llo_original>
